<compile_context>
chip_gen: v7x
topology: tpu7x:2x2x1
jax: 0.10.0
libtpu: 0.0.40
codegen_flags: <defaults>
</compile_context>

<pallas_src>
import jax
import jax.numpy as jnp
from jax.experimental import pallas as pl
from jax.experimental.pallas import tpu as pltpu

IN_DIM = 4
HID_DIM = 40
OUT_DIM = 1


def _mlp_kernel(x_ref, w1t_ref, b1_ref, w2_ref, b2_ref, o_ref):
    # x:   (IN_DIM,  TILE_B)   batch on the lane axis
    # w1t: (HID_DIM, IN_DIM)   = w1.T, VMEM-resident
    # b1:  (HID_DIM, 1)
    # w2:  (HID_DIM, OUT_DIM)  = (40, 1)
    # b2:  (1, 1)
    # o:   (OUT_DIM, TILE_B)   = (1, TILE_B), lane-dense stores
    x = x_ref[...].astype(jnp.float32)
    w1t = w1t_ref[...]

    # Layer 1 on the VPU: K=4 broadcast multiply-adds (unrolled at trace time).
    h = b1_ref[...] + w1t[:, 0:1] * x[0:1, :]
    for k in range(1, IN_DIM):
        h = h + w1t[:, k:k + 1] * x[k:k + 1, :]
    h = jnp.maximum(h, 0.0)  # ReLU

    # Layer 2: weighted reduction over the 40 hidden rows (sublane reduce).
    y = jnp.sum(w2_ref[...] * h, axis=0, keepdims=True) + b2_ref[...]
    o_ref[...] = y.astype(o_ref.dtype)


def simple_model_forward(x, w1, b1, w2, b2, *, tile_b=1024):
    """x: (B, 4) -> (B, 1). Weights stored transposed vs PyTorch ([in, out])."""
    B = x.shape[0]
    lane = 128
    # Tile size: multiple of 128 lanes, no larger than the (padded) batch.
    tile_b = max(lane, min(pl.cdiv(tile_b, lane) * lane,
                           pl.cdiv(B, lane) * lane))
    b_pad = pl.cdiv(B, tile_b) * tile_b
    grid = (b_pad // tile_b,)

    # Present batch on the lane (last) axis; pad to a whole number of tiles.
    x_t = jnp.zeros((IN_DIM, b_pad), x.dtype).at[:, :B].set(x.T)
    w1t = w1.T.astype(jnp.float32)                 # (40, 4)
    b1c = b1.reshape(HID_DIM, 1).astype(jnp.float32)
    w2c = w2.reshape(HID_DIM, OUT_DIM).astype(jnp.float32)
    b2c = b2.reshape(1, 1).astype(jnp.float32)

    out_t = pl.pallas_call(
        _mlp_kernel,
        out_shape=jax.ShapeDtypeStruct((OUT_DIM, b_pad), x.dtype),
        grid=grid,
        in_specs=[
            # Streamed input: one batch tile per grid step.
            pl.BlockSpec((IN_DIM, tile_b), lambda i: (0, i)),
            # Tiny weights/biases: constant index_map -> VMEM-resident.
            pl.BlockSpec((HID_DIM, IN_DIM), lambda i: (0, 0)),
            pl.BlockSpec((HID_DIM, 1), lambda i: (0, 0)),
            pl.BlockSpec((HID_DIM, OUT_DIM), lambda i: (0, 0)),
            pl.BlockSpec((1, 1), lambda i: (0, 0)),
        ],
        out_specs=pl.BlockSpec((OUT_DIM, tile_b), lambda i: (0, i)),
        compiler_params=pltpu.CompilerParams(
            dimension_semantics=("parallel",)),
    )(x_t, w1t, b1c, w2c, b2c)

    return out_t[:, :B].T  # (B, 1)


def init_params(key):
    # Deterministic init mimicking PyTorch's default U(-1/sqrt(fan_in), 1/sqrt(fan_in)).
    k1, k2, k3, k4 = jax.random.split(key, 4)
    bound1 = 1.0 / (IN_DIM ** 0.5)
    bound2 = 1.0 / (HID_DIM ** 0.5)
    w1 = jax.random.uniform(k1, (IN_DIM, HID_DIM), jnp.float32, -bound1, bound1)
    b1 = jax.random.uniform(k2, (1, HID_DIM), jnp.float32, -bound1, bound1)
    w2 = jax.random.uniform(k3, (HID_DIM, OUT_DIM), jnp.float32, -bound2, bound2)
    b2 = jax.random.uniform(k4, (1, OUT_DIM), jnp.float32, -bound2, bound2)
    return w1, b1, w2, b2


if __name__ == "__main__":
    key = jax.random.PRNGKey(0)
    kx, kp = jax.random.split(key)
    B = 8
    x = jax.random.normal(kx, (B, IN_DIM), jnp.float32)
    w1, b1, w2, b2 = init_params(kp)

    out = simple_model_forward(x, w1, b1, w2, b2)
    out = jax.block_until_ready(out)

    # Sanity check against plain-JAX reference.
    ref = jnp.maximum(x @ w1 + b1, 0.0) @ w2 + b2
    assert out.shape == (B, OUT_DIM)
    assert jnp.allclose(out, ref, atol=1e-5, rtol=1e-5)
    print("KERNEL_OK")
</pallas_src>

<mosaic_0001>
module attributes {stable_mosaic.version = 11 : i64} {
  func.func @_mlp_kernel(%arg0: i32, %arg1: memref<4x128xf32, #tpu.memory_space<vmem>>, %arg2: memref<40x4xf32, #tpu.memory_space<vmem>>, %arg3: memref<40x1xf32, #tpu.memory_space<vmem>>, %arg4: memref<40x1xf32, #tpu.memory_space<vmem>>, %arg5: memref<1x1xf32, #tpu.memory_space<vmem>>, %arg6: memref<1x128xf32, #tpu.memory_space<vmem>>) attributes {dimension_semantics = [#tpu.dimension_semantics<parallel>], iteration_bounds = array<i64: 1>, scalar_prefetch = 0 : i64, scratch_operands = 0 : i64, tpu.core_type = #tpu.core_type<tc>, window_params = [{transform_indices = @transform_0, window_bounds = array<i64: 4, 128>}, {pipeline_mode = #tpu.pipeline_mode<synchronous>, transform_indices = @transform_1, window_bounds = array<i64: 40, 4>}, {pipeline_mode = #tpu.pipeline_mode<synchronous>, transform_indices = @transform_2, window_bounds = array<i64: 40, 1>}, {pipeline_mode = #tpu.pipeline_mode<synchronous>, transform_indices = @transform_3, window_bounds = array<i64: 40, 1>}, {pipeline_mode = #tpu.pipeline_mode<synchronous>, transform_indices = @transform_4, window_bounds = array<i64: 1, 1>}, {transform_indices = @transform_5, window_bounds = array<i64: 1, 128>}]} {
    %c0 = arith.constant 0 : index
    %c0_0 = arith.constant 0 : index
    %0 = vector.load %arg1[%c0, %c0_0] : memref<4x128xf32, #tpu.memory_space<vmem>>, vector<4x128xf32>
    %c0_1 = arith.constant 0 : index
    %c0_2 = arith.constant 0 : index
    %1 = vector.load %arg2[%c0_1, %c0_2] : memref<40x4xf32, #tpu.memory_space<vmem>>, vector<40x4xf32>
    %c0_3 = arith.constant 0 : index
    %c0_4 = arith.constant 0 : index
    %2 = vector.load %arg3[%c0_3, %c0_4] : memref<40x1xf32, #tpu.memory_space<vmem>>, vector<40x1xf32>
    %3 = vector.extract_strided_slice %1 {offsets = [0, 0], sizes = [40, 1], strides = [1, 1]} : vector<40x4xf32> to vector<40x1xf32>
    %4 = vector.extract_strided_slice %0 {offsets = [0, 0], sizes = [1, 128], strides = [1, 1]} : vector<4x128xf32> to vector<1x128xf32>
    %5 = vector.broadcast %3 : vector<40x1xf32> to vector<40x128xf32>
    %6 = vector.broadcast %4 : vector<1x128xf32> to vector<40x128xf32>
    %7 = arith.mulf %5, %6 : vector<40x128xf32>
    %8 = vector.broadcast %2 : vector<40x1xf32> to vector<40x128xf32>
    %9 = arith.addf %8, %7 : vector<40x128xf32>
    %10 = vector.extract_strided_slice %1 {offsets = [0, 1], sizes = [40, 1], strides = [1, 1]} : vector<40x4xf32> to vector<40x1xf32>
    %11 = vector.extract_strided_slice %0 {offsets = [1, 0], sizes = [1, 128], strides = [1, 1]} : vector<4x128xf32> to vector<1x128xf32>
    %12 = vector.broadcast %10 : vector<40x1xf32> to vector<40x128xf32>
    %13 = vector.broadcast %11 : vector<1x128xf32> to vector<40x128xf32>
    %14 = arith.mulf %12, %13 : vector<40x128xf32>
    %15 = arith.addf %9, %14 : vector<40x128xf32>
    %16 = vector.extract_strided_slice %1 {offsets = [0, 2], sizes = [40, 1], strides = [1, 1]} : vector<40x4xf32> to vector<40x1xf32>
    %17 = vector.extract_strided_slice %0 {offsets = [2, 0], sizes = [1, 128], strides = [1, 1]} : vector<4x128xf32> to vector<1x128xf32>
    %18 = vector.broadcast %16 : vector<40x1xf32> to vector<40x128xf32>
    %19 = vector.broadcast %17 : vector<1x128xf32> to vector<40x128xf32>
    %20 = arith.mulf %18, %19 : vector<40x128xf32>
    %21 = arith.addf %15, %20 : vector<40x128xf32>
    %22 = vector.extract_strided_slice %1 {offsets = [0, 3], sizes = [40, 1], strides = [1, 1]} : vector<40x4xf32> to vector<40x1xf32>
    %23 = vector.extract_strided_slice %0 {offsets = [3, 0], sizes = [1, 128], strides = [1, 1]} : vector<4x128xf32> to vector<1x128xf32>
    %24 = vector.broadcast %22 : vector<40x1xf32> to vector<40x128xf32>
    %25 = vector.broadcast %23 : vector<1x128xf32> to vector<40x128xf32>
    %26 = arith.mulf %24, %25 : vector<40x128xf32>
    %27 = arith.addf %21, %26 : vector<40x128xf32>
    %cst = arith.constant 0.000000e+00 : f32
    %28 = vector.broadcast %cst : f32 to vector<40x128xf32>
    %29 = arith.maximumf %27, %28 : vector<40x128xf32>
    %c0_5 = arith.constant 0 : index
    %c0_6 = arith.constant 0 : index
    %30 = vector.load %arg4[%c0_5, %c0_6] : memref<40x1xf32, #tpu.memory_space<vmem>>, vector<40x1xf32>
    %31 = vector.broadcast %30 : vector<40x1xf32> to vector<40x128xf32>
    %32 = arith.mulf %31, %29 : vector<40x128xf32>
    %cst_7 = arith.constant dense<0.000000e+00> : vector<128xf32>
    %33 = vector.multi_reduction <add>, %32, %cst_7 [0] : vector<40x128xf32> to vector<128xf32>
    %34 = vector.shape_cast %33 : vector<128xf32> to vector<1x128xf32>
    %c0_8 = arith.constant 0 : index
    %c0_9 = arith.constant 0 : index
    %35 = vector.load %arg5[%c0_8, %c0_9] : memref<1x1xf32, #tpu.memory_space<vmem>>, vector<1x1xf32>
    %36 = vector.broadcast %35 : vector<1x1xf32> to vector<1x128xf32>
    %37 = arith.addf %34, %36 : vector<1x128xf32>
    %c0_10 = arith.constant 0 : index
    %c0_11 = arith.constant 0 : index
    %38 = vector.load %arg6[%c0_10, %c0_11] : memref<1x128xf32, #tpu.memory_space<vmem>>, vector<1x128xf32>
    tpu.vector_store %arg6[%c0_10, %c0_11], %37 {strides = array<i32>} : memref<1x128xf32, #tpu.memory_space<vmem>>, vector<1x128xf32>,
    return
  }
  func.func @transform_0(%arg0: i32) -> (i32, i32) {
    %c0_i32 = arith.constant 0 : i32
    %c0_i32_0 = arith.constant 0 : i32
    return %c0_i32, %arg0 : i32, i32
  }
  func.func @transform_1(%arg0: i32) -> (i32, i32) {
    %c0_i32 = arith.constant 0 : i32
    %c0_i32_0 = arith.constant 0 : i32
    %c0_i32_1 = arith.constant 0 : i32
    return %c0_i32, %c0_i32_0 : i32, i32
  }
  func.func @transform_2(%arg0: i32) -> (i32, i32) {
    %c0_i32 = arith.constant 0 : i32
    %c0_i32_0 = arith.constant 0 : i32
    %c0_i32_1 = arith.constant 0 : i32
    return %c0_i32, %c0_i32_0 : i32, i32
  }
  func.func @transform_3(%arg0: i32) -> (i32, i32) {
    %c0_i32 = arith.constant 0 : i32
    %c0_i32_0 = arith.constant 0 : i32
    %c0_i32_1 = arith.constant 0 : i32
    return %c0_i32, %c0_i32_0 : i32, i32
  }
  func.func @transform_4(%arg0: i32) -> (i32, i32) {
    %c0_i32 = arith.constant 0 : i32
    %c0_i32_0 = arith.constant 0 : i32
    %c0_i32_1 = arith.constant 0 : i32
    return %c0_i32, %c0_i32_0 : i32, i32
  }
  func.func @transform_5(%arg0: i32) -> (i32, i32) {
    %c0_i32 = arith.constant 0 : i32
    %c0_i32_0 = arith.constant 0 : i32
    return %c0_i32, %arg0 : i32, i32
  }
}

</mosaic_0001>

<llo_original>
// kernel: tpu_custom_call.1
$region0: #{tpu_custom_call.1}
  #allocation0 [shape = 'u32[]', space=smem, size = 0x4, offset = 0x4, fixed_abs, tag = 'smem constant byte address 0x4 - core index']
  #allocation1 [shape = 'u32[144,128]{1,0:T(1,128)}', space=vmem, size = 0x12000, scoped, tag = 'internal scratch']
  #allocation2 [shape = 'f32[1,1]{1,0:T(1,128)S(1)}', space=vmem, size = 0x200, scoped, tag = 'scoped memory for tpu_custom_call.1']
  %s0 = inlined_call_operand.vmem [shape: f32[4,128], index: 0, kind: input, shape index: {}]
  %s1 = inlined_call_operand.vmem [shape: f32[40,4], index: 1, kind: input, shape index: {}]
  %s2 = inlined_call_operand.vmem [shape: f32[40,1], index: 2, kind: input, shape index: {}]
  %s3 = inlined_call_operand.vmem [shape: f32[40,1], index: 3, kind: input, shape index: {}]
  %s4 = inlined_call_operand.<no memory space> [shape: f32[1,1], index: 4, kind: input, shape index: {}]
  %s5 = inlined_call_operand.hbm [shape: f32[1,128], index: 5, kind: output, shape index: {}]
  %s6 = sld [smem:[#allocation0]]
  $region30: #{tpu_custom_call.1} parent=0
    _
  %s8 = ssub.s32 1, %s6
  %s9 = scalar_select 0, %s8, %s6
  %v10 = vstv %s4
  %11 = vst [vmem:[#allocation2] sm:$0x1] %v10
  $region1: #{tpu_custom_call.1} parent=0
    #allocation3 [shape = 'u8[512]{0}', space=vmem, size = 0x400, scoped, tag = 'output window, operand 0, single buffered']
    #allocation4 [shape = 's32[1]{0}', space=sflag, size = 0x4, scoped, tag = 'scoped memory for tpu_custom_call.1']
    %12 = vsyncpa [#allocation4], 0
    // Predicated region
    $region2: #{tpu_custom_call.1} parent=1 // pred_check
      _
    $region3: #{tpu_custom_call.1} parent=1 // pred_check_branch
      %14 = sbr.rel (0) target = $region5
    $region4: #{tpu_custom_call.1} parent=1 // pred_region
      _
    $region5: #{tpu_custom_call.1} parent=1 // pred_fallthru
      _
    // Predicated region
    $region6: #{tpu_custom_call.1} parent=1 // pred_check
      _
    $region7: #{tpu_custom_call.1} parent=1 // pred_check_branch
      %16 = sbr.rel (0) target = $region9
    $region8: #{tpu_custom_call.1} parent=1 // pred_region
      _
    $region9: #{tpu_custom_call.1} parent=1 // pred_fallthru
      _
    // Predicated region
    $region10: #{tpu_custom_call.1} parent=1 // pred_check
      _
    $region11: #{tpu_custom_call.1} parent=1 // pred_check_branch
      %18 = sbr.rel (0) target = $region13
    $region12: #{tpu_custom_call.1} parent=1 // pred_region
      _
    $region13: #{tpu_custom_call.1} parent=1 // pred_fallthru
      _
    // Predicated region
    $region14: #{tpu_custom_call.1} parent=1 // pred_check
      _
    $region15: #{tpu_custom_call.1} parent=1 // pred_check_branch
      %20 = sbr.rel (0) target = $region17
    $region16: #{tpu_custom_call.1} parent=1 // pred_region
      _
    $region17: #{tpu_custom_call.1} parent=1 // pred_fallthru
      _
    // Predicated region
    $region18: #{tpu_custom_call.1} parent=1 // pred_check
      _
    $region19: #{tpu_custom_call.1} parent=1 // pred_check_branch
      %22 = sbr.rel (0) target = $region21
    $region20: #{tpu_custom_call.1} parent=1 // pred_region
      _
    $region21: #{tpu_custom_call.1} parent=1 // pred_fallthru
      _
    %v23 = vld [vmem:[%s0] sm:$0xf]
    %v24 = vld [vmem:[%s1] sm:$0xff]
    %v25 = vld [vmem:[%s1 + $0x8] sm:$0xff]
    %v26 = vld [vmem:[%s1 + $0x10] sm:$0xff]
    %v27 = vld [vmem:[%s1 + $0x18] sm:$0xff]
    %v28 = vld [vmem:[%s1 + $0x20] sm:$0xff]
    %v29 = vld [vmem:[%s2] sm:$0xff]
    %v30 = vld [vmem:[%s2 + $0x8] sm:$0xff]
    %v31 = vld [vmem:[%s2 + $0x10] sm:$0xff]
    %v32 = vld [vmem:[%s2 + $0x18] sm:$0xff]
    %v33 = vld [vmem:[%s2 + $0x20] sm:$0xff]
    %35 = vset.pattern.permute.xlu0 0
    %36 = vperm.xlu0 %35, %v24
    %v37 = vpop.permute.xlu0 %36
    %40 = vset.pattern.permute.xlu0 0
    %41 = vperm.xlu0 %40, %v25
    %v42 = vpop.permute.xlu0 %41
    %45 = vset.pattern.permute.xlu0 0
    %46 = vperm.xlu0 %45, %v26
    %v47 = vpop.permute.xlu0 %46
    %50 = vset.pattern.permute.xlu0 0
    %51 = vperm.xlu0 %50, %v27
    %v52 = vpop.permute.xlu0 %51
    %55 = vset.pattern.permute.xlu0 0
    %56 = vperm.xlu0 %55, %v28
    %v57 = vpop.permute.xlu0 %56
    %v59 = vlaneseq
    %v60 = vshrl.u32 %v59, 7
    %v61 = vsub.s32 0, %v60
    %v62 = vrot.slane %v23, %v61
    %v63 = vmul.f32 %v37, %v62
    %v64 = vmul.f32 %v42, %v62
    %v65 = vmul.f32 %v47, %v62
    %v66 = vmul.f32 %v52, %v62
    %v67 = vmul.f32 %v57, %v62
    %69 = vset.pattern.permute.xlu0 0
    %70 = vperm.xlu0 %69, %v29
    %v71 = vpop.permute.xlu0 %70
    %74 = vset.pattern.permute.xlu0 0
    %75 = vperm.xlu0 %74, %v30
    %v76 = vpop.permute.xlu0 %75
    %79 = vset.pattern.permute.xlu0 0
    %80 = vperm.xlu0 %79, %v31
    %v81 = vpop.permute.xlu0 %80
    %84 = vset.pattern.permute.xlu0 0
    %85 = vperm.xlu0 %84, %v32
    %v86 = vpop.permute.xlu0 %85
    %89 = vset.pattern.permute.xlu0 0
    %90 = vperm.xlu0 %89, %v33
    %v91 = vpop.permute.xlu0 %90
    %v93 = vadd.f32 %v71, %v63
    %v94 = vadd.f32 %v76, %v64
    %v95 = vadd.f32 %v81, %v65
    %v96 = vadd.f32 %v86, %v66
    %v97 = vadd.f32 %v91, %v67
    %98 = vset.pattern.permute.xlu0 1
    %99 = vperm.xlu0 %98, %v24
    %v100 = vpop.permute.xlu0 %99
    %102 = vset.pattern.permute.xlu0 1
    %103 = vperm.xlu0 %102, %v25
    %v104 = vpop.permute.xlu0 %103
    %106 = vset.pattern.permute.xlu0 1
    %107 = vperm.xlu0 %106, %v26
    %v108 = vpop.permute.xlu0 %107
    %110 = vset.pattern.permute.xlu0 1
    %111 = vperm.xlu0 %110, %v27
    %v112 = vpop.permute.xlu0 %111
    %114 = vset.pattern.permute.xlu0 1
    %115 = vperm.xlu0 %114, %v28
    %v116 = vpop.permute.xlu0 %115
    %v118 = vlaneseq
    %v119 = vshrl.u32 %v118, 7
    %v120 = vsub.s32 1, %v119
    %v121 = vrot.slane %v23, %v120
    %v122 = vmul.f32 %v100, %v121
    %v123 = vmul.f32 %v104, %v121
    %v124 = vmul.f32 %v108, %v121
    %v125 = vmul.f32 %v112, %v121
    %v126 = vmul.f32 %v116, %v121
    %v127 = vadd.f32 %v93, %v122
    %v128 = vadd.f32 %v94, %v123
    %v129 = vadd.f32 %v95, %v124
    %v130 = vadd.f32 %v96, %v125
    %v131 = vadd.f32 %v97, %v126
    %132 = vset.pattern.permute.xlu0 2
    %133 = vperm.xlu0 %132, %v24
    %v134 = vpop.permute.xlu0 %133
    %136 = vset.pattern.permute.xlu0 2
    %137 = vperm.xlu0 %136, %v25
    %v138 = vpop.permute.xlu0 %137
    %140 = vset.pattern.permute.xlu0 2
    %141 = vperm.xlu0 %140, %v26
    %v142 = vpop.permute.xlu0 %141
    %144 = vset.pattern.permute.xlu0 2
    %145 = vperm.xlu0 %144, %v27
    %v146 = vpop.permute.xlu0 %145
    %148 = vset.pattern.permute.xlu0 2
    %149 = vperm.xlu0 %148, %v28
    %v150 = vpop.permute.xlu0 %149
    %v152 = vlaneseq
    %v153 = vshrl.u32 %v152, 7
    %v154 = vsub.s32 2, %v153
    %v155 = vrot.slane %v23, %v154
    %v156 = vmul.f32 %v134, %v155
    %v157 = vmul.f32 %v138, %v155
    %v158 = vmul.f32 %v142, %v155
    %v159 = vmul.f32 %v146, %v155
    %v160 = vmul.f32 %v150, %v155
    %v161 = vadd.f32 %v127, %v156
    %v162 = vadd.f32 %v128, %v157
    %v163 = vadd.f32 %v129, %v158
    %v164 = vadd.f32 %v130, %v159
    %v165 = vadd.f32 %v131, %v160
    %166 = vset.pattern.permute.xlu0 3
    %167 = vperm.xlu0 %166, %v24
    %v168 = vpop.permute.xlu0 %167
    %170 = vset.pattern.permute.xlu0 3
    %171 = vperm.xlu0 %170, %v25
    %v172 = vpop.permute.xlu0 %171
    %174 = vset.pattern.permute.xlu0 3
    %175 = vperm.xlu0 %174, %v26
    %v176 = vpop.permute.xlu0 %175
    %178 = vset.pattern.permute.xlu0 3
    %179 = vperm.xlu0 %178, %v27
    %v180 = vpop.permute.xlu0 %179
    %182 = vset.pattern.permute.xlu0 3
    %183 = vperm.xlu0 %182, %v28
    %v184 = vpop.permute.xlu0 %183
    %v186 = vlaneseq
    %v187 = vshrl.u32 %v186, 7
    %v188 = vsub.s32 3, %v187
    %v189 = vrot.slane %v23, %v188
    %v190 = vmul.f32 %v168, %v189
    %v191 = vmul.f32 %v172, %v189
    %v192 = vmul.f32 %v176, %v189
    %v193 = vmul.f32 %v180, %v189
    %v194 = vmul.f32 %v184, %v189
    %v195 = vadd.f32 %v161, %v190
    %v196 = vadd.f32 %v162, %v191
    %v197 = vadd.f32 %v163, %v192
    %v198 = vadd.f32 %v164, %v193
    %v199 = vadd.f32 %v165, %v194
    %v200 = vmax.f32 %v195, 0.0
    %v201 = vmax.f32 %v196, 0.0
    %v202 = vmax.f32 %v197, 0.0
    %v203 = vmax.f32 %v198, 0.0
    %v204 = vmax.f32 %v199, 0.0
    %v205 = vld [vmem:[%s3] sm:$0xff]
    %v206 = vld [vmem:[%s3 + $0x8] sm:$0xff]
    %v207 = vld [vmem:[%s3 + $0x10] sm:$0xff]
    %v208 = vld [vmem:[%s3 + $0x18] sm:$0xff]
    %v209 = vld [vmem:[%s3 + $0x20] sm:$0xff]
    %211 = vset.pattern.permute.xlu0 0
    %212 = vperm.xlu0 %211, %v205
    %v213 = vpop.permute.xlu0 %212
    %216 = vset.pattern.permute.xlu0 0
    %217 = vperm.xlu0 %216, %v206
    %v218 = vpop.permute.xlu0 %217
    %221 = vset.pattern.permute.xlu0 0
    %222 = vperm.xlu0 %221, %v207
    %v223 = vpop.permute.xlu0 %222
    %226 = vset.pattern.permute.xlu0 0
    %227 = vperm.xlu0 %226, %v208
    %v228 = vpop.permute.xlu0 %227
    %231 = vset.pattern.permute.xlu0 0
    %232 = vperm.xlu0 %231, %v209
    %v233 = vpop.permute.xlu0 %232
    %v235 = vmul.f32 %v213, %v200
    %v236 = vmul.f32 %v218, %v201
    %v237 = vmul.f32 %v223, %v202
    %v238 = vmul.f32 %v228, %v203
    %v239 = vmul.f32 %v233, %v204
    %v240 = vadd.f32 %v235, %v236
    %v241 = vadd.f32 %v240, %v237
    %v242 = vadd.f32 %v241, %v238
    %v243 = vadd.f32 %v242, %v239
    %v244 = vrot.slane %v243, 4
    %v245 = vadd.f32 %v243, %v244
    %v246 = vrot.slane %v245, 2
    %v247 = vadd.f32 %v245, %v246
    %v248 = vrot.slane %v247, 1
    %v249 = vadd.f32 %v247, %v248
    %v250 = vld [vmem:[#allocation2] sm:$0x1]
    %252 = vset.pattern.permute.xlu0 0
    %253 = vperm.xlu0 %252, %v250
    %v254 = vpop.permute.xlu0 %253
    %v256 = vlaneseq
    %v257 = vshrl.u32 %v256, 7
    %v258 = vsub.s32 0, %v257
    %v259 = vrot.slane %v254, %v258
    %v260 = vadd.f32 %v249, %v259
    %261 = vst [vmem:[#allocation3] sm:$0x1] %v260
    // Predicated region
    $region22: #{tpu_custom_call.1} parent=1 // pred_check
      _
    $region23: #{tpu_custom_call.1} parent=1 // pred_check_branch
      %263 = sbr.rel (0) target = $region25
    $region24: #{tpu_custom_call.1} parent=1 // pred_region
      %s265 = ssub.s32 16, 16
      %266 = vsyncadd [#allocation4], %s265
      %s268 = sshll.u32 [#allocation3], 4
      %s269 = int_to_ptr.vmem [resolvable:$true] %s268
      %271 = dma.vmem_to_hbm [thread:$0]  %s269, 16, %s5, [#allocation4]
    $region25: #{tpu_custom_call.1} parent=1 // pred_fallthru
      _
    // Predicated region
    $region26: #{tpu_custom_call.1} parent=1 // pred_check
      _
    $region27: #{tpu_custom_call.1} parent=1 // pred_check_branch
      %273 = sbr.rel (0) target = $region29
    $region28: #{tpu_custom_call.1} parent=1 // pred_region
      %274 = dma.done [#allocation4], 16
    $region29: #{tpu_custom_call.1} parent=1 // pred_fallthru
      _
    %275 = vsyncpa [#allocation4], 1

</llo_original>
